<compile_context>
chip_gen: v5e
topology: v5e:2x2
jax: 0.10.0
libtpu: 0.0.40
codegen_flags: <defaults>
</compile_context>

<pallas_src>
import functools
import math

import jax
import jax.numpy as jnp
from jax.experimental import pallas as pl
from jax.experimental.pallas import tpu as pltpu

LANE = 128
_MIB = 1 << 20


def _round_up(x, m):
    return -(-x // m) * m


def _pick_tile(n, preferred=512):
    """Return (tile, padded_n) for a square-ish adj dimension.

    tile is a multiple of 128.  Prefer big tiles (amortize the ~0.35us/step
    pipeline overhead and feed the 256-wide MXU on v6e/v7x), but only accept a
    tile if the extra zero padding it forces stays small relative to N (padding
    adj grows HBM traffic quadratically, which would defeat the purpose).
    """
    n128 = _round_up(n, 128)
    if n128 <= preferred:
        return n128, n128
    for t in (preferred, 256, 128):
        n_pad = _round_up(n128, t)
        slack = max(n128 // 8, t // 2)
        if (n_pad - n128) <= slack or t == 128:
            return t, n_pad
    return 128, n128


def _pad2(x, rows, cols):
    """Pad a 2-D array to (rows, cols).

    If a copy is made anyway, also cast to bf16 so the kernel streams half the
    bytes.  If no padding is needed the array passes through untouched and the
    kernel casts per tile instead (saves a full wrapper-side HBM pass).
    """
    r, c = x.shape
    if r == rows and c == cols:
        return x
    return jnp.pad(x, ((0, rows - r), (0, cols - c))).astype(jnp.bfloat16)


def _vmem_limit(working_set_bytes):
    # Working set + headroom for pipeline-internal scratch, capped at v7x's
    # 64 MiB physical VMEM per TensorCore.
    return int(min(max(working_set_bytes + 8 * _MIB, 32 * _MIB), 64 * _MIB))


def _itemsize(x):
    return jnp.dtype(x.dtype).itemsize


# ---------------------------------------------------------------------------
# Fused fast-path kernel (single grid point): out = ReLU(adj @ (feat @ W) + b)
# ---------------------------------------------------------------------------
def _fused_kernel(feat_ref, w_ref, adj_ref, b_ref, out_ref):
    support = jnp.dot(
        feat_ref[...].astype(jnp.bfloat16), w_ref[...],
        preferred_element_type=jnp.float32,
    ).astype(jnp.bfloat16)
    out = jnp.dot(
        adj_ref[...].astype(jnp.bfloat16), support,
        preferred_element_type=jnp.float32,
    )
    out_ref[...] = jnp.maximum(out + b_ref[...], 0.0).astype(out_ref.dtype)


# ---------------------------------------------------------------------------
# Kernel A: support = feature @ W    (computed once, written as bf16)
# ---------------------------------------------------------------------------
def _support_kernel(feat_ref, w_ref, sup_ref):
    sup_ref[...] = jnp.dot(
        feat_ref[...].astype(jnp.bfloat16), w_ref[...],
        preferred_element_type=jnp.float32,
    ).astype(sup_ref.dtype)


# ---------------------------------------------------------------------------
# Kernel B: out = ReLU(adj @ support + bias), tiled over (row tiles, k tiles)
# ---------------------------------------------------------------------------
def _aggregate_kernel(adj_ref, sup_ref, b_ref, out_ref, acc_ref, *,
                      sup_resident, tk):
    k = pl.program_id(1)

    @pl.when(k == 0)
    def _():
        # Fold the bias into the accumulator init: saves a (tm, fo) VPU add in
        # the epilogue and keeps the finalize step short.
        acc_ref[...] = jnp.broadcast_to(b_ref[...], acc_ref.shape)

    if sup_resident:
        # Whole support matrix is VMEM-resident; slice the current K strip.
        sup = sup_ref[pl.ds(pl.multiple_of(k * tk, 128), tk), :]
    else:
        sup = sup_ref[...]

    # adj tiles are cast to bf16 in-kernel (f32 adj is streamed straight from
    # HBM with no wrapper-side conversion pass); no-op if already bf16.
    acc_ref[...] += jnp.dot(
        adj_ref[...].astype(jnp.bfloat16), sup,
        preferred_element_type=jnp.float32,
    )

    @pl.when(k == pl.num_programs(1) - 1)
    def _():
        out_ref[...] = jnp.maximum(acc_ref[...], 0.0).astype(out_ref.dtype)


# ---------------------------------------------------------------------------
# Wrapper
# ---------------------------------------------------------------------------
def graph_conv_layer(feature, adj, weight, bias, *, out_dtype=None):
    """feature: [N, F_in], adj: [N, N], weight: [F_in, F_out], bias: [F_out].

    out_dtype: output dtype (default feature.dtype); pass jnp.bfloat16 when
    stacking GCN layers to halve output writeback bytes.
    """
    n, f_in = feature.shape
    f_out = weight.shape[1]
    if out_dtype is None:
        out_dtype = feature.dtype
    out_itemsize = jnp.dtype(out_dtype).itemsize

    tile, n_pad = _pick_tile(n, preferred=512)
    fi_pad = _round_up(f_in, LANE)
    fo_pad = _round_up(f_out, LANE)  # lane-dense output (multiple of 128)

    # Small parameters: pad + cast once in the wrapper (negligible traffic).
    w_p = jnp.pad(weight, ((0, fi_pad - f_in), (0, fo_pad - f_out))).astype(
        jnp.bfloat16)
    bias_p = jnp.pad(bias, (0, fo_pad - f_out)).astype(jnp.float32).reshape(
        1, fo_pad)

    # Large operands: copied (pad + bf16) only when padding is required.
    feat_p = _pad2(feature, n_pad, fi_pad)
    adj_p = _pad2(adj, n_pad, n_pad)

    # ------------------------------------------------------------------
    # Tiny-graph fast path: one fused kernel, support never touches HBM.
    # ------------------------------------------------------------------
    fused_bytes = (n_pad * fi_pad * _itemsize(feat_p)
                   + fi_pad * fo_pad * 2
                   + n_pad * n_pad * _itemsize(adj_p)
                   + n_pad * fo_pad * (2 + out_itemsize)
                   + fo_pad * 4)
    if n_pad <= 512 and fused_bytes <= 4 * _MIB:
        out_p = pl.pallas_call(
            _fused_kernel,
            out_shape=jax.ShapeDtypeStruct((n_pad, fo_pad), out_dtype),
        )(feat_p, w_p, adj_p, bias_p)
        return out_p[:n, :f_out]

    # ------------------------------------------------------------------
    # Tiled path.  Keep >=2 row tiles when possible (v7x: one per TensorCore).
    # ------------------------------------------------------------------
    tm = tk = tile
    if n_pad // tm < 2 and n_pad >= 256:
        tm = n_pad // 2  # multiple of 64, still sublane-aligned

    # Kernel A: support[N, F_out] = feature @ W  (row-tiled, W resident once).
    # TODO(synk): tile the F_in contraction (and F_out) here if the resident
    # weight or a (tm, fi_pad) feature strip outgrows VMEM.
    vmem_a = (2 * tm * fi_pad * _itemsize(feat_p)
              + fi_pad * fo_pad * 2
              + 2 * tm * fo_pad * 2)
    support = pl.pallas_call(
        _support_kernel,
        out_shape=jax.ShapeDtypeStruct((n_pad, fo_pad), jnp.bfloat16),
        grid_spec=pltpu.PrefetchScalarGridSpec(
            num_scalar_prefetch=0,
            grid=(n_pad // tm,),
            in_specs=[
                pl.BlockSpec((tm, fi_pad), lambda i: (i, 0)),
                pl.BlockSpec((fi_pad, fo_pad), lambda i: (0, 0),
                             pipeline_mode=pl.Buffered(1)),
            ],
            out_specs=pl.BlockSpec((tm, fo_pad), lambda i: (i, 0)),
        ),
        compiler_params=pltpu.CompilerParams(
            dimension_semantics=("parallel",),
            vmem_limit_bytes=_vmem_limit(vmem_a),
        ),
    )(feat_p, w_p)

    # Kernel B: out = ReLU(adj @ support + bias)
    #   grid = (row tiles [parallel], contraction tiles [arbitrary, last]).
    sup_bytes = n_pad * fo_pad * 2
    sup_resident = sup_bytes <= 6 * _MIB
    if sup_resident:
        # Fetched once for the whole kernel (single buffer) instead of being
        # re-streamed from HBM for every row tile.
        sup_spec = pl.BlockSpec((n_pad, fo_pad), lambda i, k: (0, 0),
                                pipeline_mode=pl.Buffered(1))
        sup_buf_bytes = sup_bytes
    else:
        sup_spec = pl.BlockSpec((tk, fo_pad), lambda i, k: (k, 0))
        sup_buf_bytes = 2 * tk * fo_pad * 2

    vmem_b = (2 * tm * tk * _itemsize(adj_p)
              + sup_buf_bytes
              + fo_pad * 4
              + 2 * tm * fo_pad * out_itemsize
              + tm * fo_pad * 4)

    kernel_b = functools.partial(_aggregate_kernel,
                                 sup_resident=sup_resident, tk=tk)
    out_p = pl.pallas_call(
        kernel_b,
        out_shape=jax.ShapeDtypeStruct((n_pad, fo_pad), out_dtype),
        grid_spec=pltpu.PrefetchScalarGridSpec(
            num_scalar_prefetch=0,
            grid=(n_pad // tm, n_pad // tk),
            in_specs=[
                pl.BlockSpec((tm, tk), lambda i, k: (i, k)),   # adj tile
                sup_spec,                                      # support
                pl.BlockSpec((1, fo_pad), lambda i, k: (0, 0),
                             pipeline_mode=pl.Buffered(1)),    # bias (resident)
            ],
            out_specs=pl.BlockSpec((tm, fo_pad), lambda i, k: (i, 0)),
            scratch_shapes=[pltpu.VMEM((tm, fo_pad), jnp.float32)],
        ),
        compiler_params=pltpu.CompilerParams(
            dimension_semantics=("parallel", "arbitrary"),
            vmem_limit_bytes=_vmem_limit(vmem_b),
        ),
    )(adj_p, support, bias_p)

    return out_p[:n, :f_out]


# ---------------------------------------------------------------------------
# References
# ---------------------------------------------------------------------------
def graph_conv_layer_ref_f32(feature, adj, weight, bias):
    support = feature @ weight
    output = adj @ support
    return jnp.maximum(output + bias[None, :], 0.0)


def graph_conv_layer_ref_bf16(feature, adj, weight, bias):
    # Same precision strategy as the kernels: bf16 MXU inputs, f32 accumulate,
    # support rounded to bf16 between the two matmuls.
    support = jnp.dot(feature.astype(jnp.bfloat16), weight.astype(jnp.bfloat16),
                      preferred_element_type=jnp.float32).astype(jnp.bfloat16)
    output = jnp.dot(adj.astype(jnp.bfloat16), support,
                     preferred_element_type=jnp.float32)
    return jnp.maximum(output + bias[None, :], 0.0)


def _assert_close(out, ref, tol, what):
    err = float(jnp.max(jnp.abs(out.astype(jnp.float32) - ref))
                / (jnp.max(jnp.abs(ref)) + 1e-6))
    assert err < tol, f"{what}: relative error {err} >= {tol}"


if __name__ == "__main__":
    key = jax.random.PRNGKey(0)

    def init_params(k, f_in, f_out):
        # Mirrors the PyTorch __init__: xavier_uniform_ weight, uniform bias.
        k_w, k_b = jax.random.split(k)
        bound = math.sqrt(6.0 / (f_in + f_out))
        w = jax.random.uniform(k_w, (f_in, f_out), jnp.float32, -bound, bound)
        stdv = 1.0 / math.sqrt(f_out)
        b = jax.random.uniform(k_b, (f_out,), jnp.float32, -stdv, stdv)
        return w, b

    def run_case(k, n, f_in, f_out):
        k_f, k_a, k_p = jax.random.split(k, 3)
        feature = jax.random.normal(k_f, (n, f_in), jnp.float32)
        adj = jax.random.uniform(k_a, (n, n), jnp.float32)
        w, b = init_params(k_p, f_in, f_out)

        out = jax.block_until_ready(graph_conv_layer(feature, adj, w, b))
        assert out.shape == (n, f_out)

        # Precision-matched reference (bf16 MXU inputs, f32 accumulation).
        ref_bf16 = graph_conv_layer_ref_bf16(feature, adj, w, b)
        _assert_close(out, ref_bf16, 2e-2, f"N={n} vs bf16 ref")
        # Loose check against the full-f32 PyTorch-equivalent reference
        # (covers the intentional bf16 MXU cast).
        ref_f32 = graph_conv_layer_ref_f32(feature, adj, w, b)
        _assert_close(out, ref_f32, 5e-2, f"N={n} vs f32 ref")

    k1, k2 = jax.random.split(key)
    # Small graph: exercises the fused single-kernel fast path.
    run_case(k1, 16, 32, 64)
    # Larger lane-aligned graph: exercises the tiled two-kernel path
    # (in-kernel bf16 cast of f32 adj, VMEM-resident support, 2x2 kernel-B grid).
    run_case(k2, 1024, 300, 200)

    print("KERNEL_OK")
</pallas_src>

<mosaic_0001>
module attributes {stable_mosaic.version = 11 : i64} {
  func.func @_fused_kernel(%arg0: memref<128x128xbf16, #tpu.memory_space<vmem>>, %arg1: memref<128x128xbf16, #tpu.memory_space<vmem>>, %arg2: memref<128x128xbf16, #tpu.memory_space<vmem>>, %arg3: memref<1x128xf32, #tpu.memory_space<vmem>>, %arg4: memref<128x128xf32, #tpu.memory_space<vmem>>) attributes {dimension_semantics = [], scalar_prefetch = 0 : i64, scratch_operands = 0 : i64, tpu.core_type = #tpu.core_type<tc>} {
    %c0 = arith.constant 0 : index
    %c0_0 = arith.constant 0 : index
    %0 = vector.load %arg0[%c0, %c0_0] : memref<128x128xbf16, #tpu.memory_space<vmem>>, vector<128x128xbf16>
    %c0_1 = arith.constant 0 : index
    %c0_2 = arith.constant 0 : index
    %1 = vector.load %arg1[%c0_1, %c0_2] : memref<128x128xbf16, #tpu.memory_space<vmem>>, vector<128x128xbf16>
    %cst = arith.constant dense<0.000000e+00> : vector<128x128xf32>
    %2 = tpu.matmul %0, %1, %cst {dimension_numbers = #tpu.dot_dimension_numbers<[1], [0], [0], [1], [0, 0, 1, 1], [], []>} : vector<128x128xbf16>, vector<128x128xbf16>, vector<128x128xf32> -> vector<128x128xf32>
    %3 = arith.truncf %2 : vector<128x128xf32> to vector<128x128xbf16>
    %c0_3 = arith.constant 0 : index
    %c0_4 = arith.constant 0 : index
    %4 = vector.load %arg2[%c0_3, %c0_4] : memref<128x128xbf16, #tpu.memory_space<vmem>>, vector<128x128xbf16>
    %cst_5 = arith.constant dense<0.000000e+00> : vector<128x128xf32>
    %5 = tpu.matmul %4, %3, %cst_5 {dimension_numbers = #tpu.dot_dimension_numbers<[1], [0], [0], [1], [0, 0, 1, 1], [], []>} : vector<128x128xbf16>, vector<128x128xbf16>, vector<128x128xf32> -> vector<128x128xf32>
    %c0_6 = arith.constant 0 : index
    %c0_7 = arith.constant 0 : index
    %6 = vector.load %arg3[%c0_6, %c0_7] : memref<1x128xf32, #tpu.memory_space<vmem>>, vector<1x128xf32>
    %7 = vector.broadcast %6 : vector<1x128xf32> to vector<128x128xf32>
    %8 = arith.addf %5, %7 : vector<128x128xf32>
    %cst_8 = arith.constant 0.000000e+00 : f32
    %9 = vector.broadcast %cst_8 : f32 to vector<128x128xf32>
    %10 = arith.maximumf %8, %9 : vector<128x128xf32>
    %c0_9 = arith.constant 0 : index
    %c0_10 = arith.constant 0 : index
    %11 = vector.load %arg4[%c0_9, %c0_10] : memref<128x128xf32, #tpu.memory_space<vmem>>, vector<128x128xf32>
    tpu.vector_store %arg4[%c0_9, %c0_10], %10 {strides = array<i32>} : memref<128x128xf32, #tpu.memory_space<vmem>>, vector<128x128xf32>,
    return
  }
}

</mosaic_0001>

<llo_original>
// kernel: tpu_custom_call.1
$region0: #{tpu_custom_call.1}
  #allocation0 [shape = 'u32[]', space=smem, size = 0x4, offset = 0x4, fixed_abs, tag = 'smem constant byte address 0x4 - core index']
  #allocation1 [shape = 'u32[72,128]{1,0:T(1,128)}', space=vmem, size = 0x9000, scoped, tag = 'internal scratch']
  %s0 = inlined_call_operand.hbm [shape: bf16[128,128], index: 0, kind: input, shape index: {}]
  %s1 = inlined_call_operand.hbm [shape: bf16[128,128], index: 1, kind: input, shape index: {}]
  %s2 = inlined_call_operand.hbm [shape: bf16[128,128], index: 2, kind: input, shape index: {}]
  %s3 = inlined_call_operand.vmem [shape: f32[1,128], index: 3, kind: input, shape index: {}]
  %s4 = inlined_call_operand.hbm [shape: f32[128,128], index: 4, kind: output, shape index: {}]
  %s5 = sld [smem:[#allocation0]]
  $region38: #{tpu_custom_call.1} parent=0
    _
  %s7 = ssub.s32 1, %s5
  %s8 = scalar_select 0, %s7, %s5
  $region1: #{tpu_custom_call.1} parent=0
    #allocation2 [shape = 'u8[32768]{0}', space=vmem, size = 0x8000, scoped, tag = 'input window, operand 0, single buffered']
    #allocation3 [shape = 's32[1]{0}', space=sflag, size = 0x4, scoped, tag = 'scoped memory for tpu_custom_call.1']
    #allocation4 [shape = 's32[1]{0}', space=sflag, size = 0x4, scoped, tag = 'scoped memory for tpu_custom_call.1']
    #allocation5 [shape = 'u8[32768]{0}', space=vmem, size = 0x8000, scoped, tag = 'input window, operand 1, single buffered']
    #allocation6 [shape = 's32[1]{0}', space=sflag, size = 0x4, scoped, tag = 'scoped memory for tpu_custom_call.1']
    #allocation7 [shape = 'u8[32768]{0}', space=vmem, size = 0x8000, scoped, tag = 'input window, operand 2, single buffered']
    #allocation8 [shape = 'u8[65536]{0}', space=vmem, size = 0x10000, scoped, tag = 'output window, operand 0, single buffered']
    %9 = vsyncpa [#allocation3], 0
    %10 = vsyncpa [#allocation6], 0
    %11 = vsyncpa [#allocation4], 0
    // Predicated region
    $region2: #{tpu_custom_call.1} parent=1 // pred_check
      _
    $region3: #{tpu_custom_call.1} parent=1 // pred_check_branch
      %13 = sbr.rel (0) target = $region5
    $region4: #{tpu_custom_call.1} parent=1 // pred_region
      %15 = vsyncadd [#allocation3], 0
      %s16 = sshll.u32 %s0, 4
      %s17 = int_to_ptr.hbm [resolvable:$true] %s16
      %s18 = sshll.u32 [#allocation2], 4
      %s19 = int_to_ptr.vmem [resolvable:$true] %s18
      %24 = dma.hbm_to_vmem [thread:$0]  %s17, 1024, %s19, [#allocation3], 64, 64, 4
    $region5: #{tpu_custom_call.1} parent=1 // pred_fallthru
      _
    // Predicated region
    $region6: #{tpu_custom_call.1} parent=1 // pred_check
      _
    $region7: #{tpu_custom_call.1} parent=1 // pred_check_branch
      %26 = sbr.rel (0) target = $region9
    $region8: #{tpu_custom_call.1} parent=1 // pred_region
      %28 = vsyncadd [#allocation6], 0
      %s29 = sshll.u32 %s1, 4
      %s30 = int_to_ptr.hbm [resolvable:$true] %s29
      %s31 = sshll.u32 [#allocation5], 4
      %s32 = int_to_ptr.vmem [resolvable:$true] %s31
      %37 = dma.hbm_to_vmem [thread:$0]  %s30, 1024, %s32, [#allocation6], 64, 64, 4
    $region9: #{tpu_custom_call.1} parent=1 // pred_fallthru
      _
    // Predicated region
    $region10: #{tpu_custom_call.1} parent=1 // pred_check
      _
    $region11: #{tpu_custom_call.1} parent=1 // pred_check_branch
      %39 = sbr.rel (0) target = $region13
    $region12: #{tpu_custom_call.1} parent=1 // pred_region
      %41 = vsyncadd [#allocation6], 0
      %s42 = sshll.u32 %s2, 4
      %s43 = int_to_ptr.hbm [resolvable:$true] %s42
      %s44 = sshll.u32 [#allocation7], 4
      %s45 = int_to_ptr.vmem [resolvable:$true] %s44
      %50 = dma.hbm_to_vmem [thread:$0]  %s43, 1024, %s45, [#allocation6], 64, 64, 4
    $region13: #{tpu_custom_call.1} parent=1 // pred_fallthru
      _
    // Predicated region
    $region14: #{tpu_custom_call.1} parent=1 // pred_check
      _
    $region15: #{tpu_custom_call.1} parent=1 // pred_check_branch
      %52 = sbr.rel (0) target = $region17
    $region16: #{tpu_custom_call.1} parent=1 // pred_region
      _
    $region17: #{tpu_custom_call.1} parent=1 // pred_fallthru
      _
    // Predicated region
    $region18: #{tpu_custom_call.1} parent=1 // pred_check
      _
    $region19: #{tpu_custom_call.1} parent=1 // pred_check_branch
      %54 = sbr.rel (0) target = $region21
    $region20: #{tpu_custom_call.1} parent=1 // pred_region
      %56 = dma.done [#allocation3], 1024
    $region21: #{tpu_custom_call.1} parent=1 // pred_fallthru
      _
    // Predicated region
    $region22: #{tpu_custom_call.1} parent=1 // pred_check
      _
    $region23: #{tpu_custom_call.1} parent=1 // pred_check_branch
      %58 = sbr.rel (0) target = $region25
    $region24: #{tpu_custom_call.1} parent=1 // pred_region
      %60 = dma.done [#allocation6], 1024
    $region25: #{tpu_custom_call.1} parent=1 // pred_fallthru
      _
    // Predicated region
    $region26: #{tpu_custom_call.1} parent=1 // pred_check
      _
    $region27: #{tpu_custom_call.1} parent=1 // pred_check_branch
      %62 = sbr.rel (0) target = $region29
    $region28: #{tpu_custom_call.1} parent=1 // pred_region
      %64 = dma.done [#allocation6], 1024
    $region29: #{tpu_custom_call.1} parent=1 // pred_fallthru
      _
    %v65 = vld [vmem:[#allocation2] sm:$0xf]
    %v66 = vld [vmem:[#allocation2 + $0x4] sm:$0xf]
    %v67 = vld [vmem:[#allocation2 + $0x8] sm:$0xf]
    %v68 = vld [vmem:[#allocation2 + $0xc] sm:$0xf]
    %v69 = vld [vmem:[#allocation2 + $0x10] sm:$0xf]
    %v70 = vld [vmem:[#allocation2 + $0x14] sm:$0xf]
    %v71 = vld [vmem:[#allocation2 + $0x18] sm:$0xf]
    %v72 = vld [vmem:[#allocation2 + $0x1c] sm:$0xf]
    %v73 = vld [vmem:[#allocation2 + $0x20] sm:$0xf]
    %v74 = vld [vmem:[#allocation2 + $0x24] sm:$0xf]
    %v75 = vld [vmem:[#allocation2 + $0x28] sm:$0xf]
    %v76 = vld [vmem:[#allocation2 + $0x2c] sm:$0xf]
    %v77 = vld [vmem:[#allocation2 + $0x30] sm:$0xf]
    %v78 = vld [vmem:[#allocation2 + $0x34] sm:$0xf]
    %v79 = vld [vmem:[#allocation2 + $0x38] sm:$0xf]
    %v80 = vld [vmem:[#allocation2 + $0x3c] sm:$0xf]
    %v81 = vld [vmem:[#allocation5] sm:$0xf]
    %v82 = vld [vmem:[#allocation5 + $0x4] sm:$0xf]
    %v83 = vld [vmem:[#allocation5 + $0x8] sm:$0xf]
    %v84 = vld [vmem:[#allocation5 + $0xc] sm:$0xf]
    %v85 = vld [vmem:[#allocation5 + $0x10] sm:$0xf]
    %v86 = vld [vmem:[#allocation5 + $0x14] sm:$0xf]
    %v87 = vld [vmem:[#allocation5 + $0x18] sm:$0xf]
    %v88 = vld [vmem:[#allocation5 + $0x1c] sm:$0xf]
    %v89 = vld [vmem:[#allocation5 + $0x20] sm:$0xf]
    %v90 = vld [vmem:[#allocation5 + $0x24] sm:$0xf]
    %v91 = vld [vmem:[#allocation5 + $0x28] sm:$0xf]
    %v92 = vld [vmem:[#allocation5 + $0x2c] sm:$0xf]
    %v93 = vld [vmem:[#allocation5 + $0x30] sm:$0xf]
    %v94 = vld [vmem:[#allocation5 + $0x34] sm:$0xf]
    %v95 = vld [vmem:[#allocation5 + $0x38] sm:$0xf]
    %v96 = vld [vmem:[#allocation5 + $0x3c] sm:$0xf]
    %v113 = vunpack.c.l.b16 %v65
    %v114 = vunpack.c.l.b16 %v66
    %v115 = vunpack.c.l.b16 %v67
    %v116 = vunpack.c.l.b16 %v68
    %v117 = vunpack.c.l.b16 %v69
    %v118 = vunpack.c.l.b16 %v70
    %v119 = vunpack.c.l.b16 %v71
    %v120 = vunpack.c.l.b16 %v72
    %v121 = vunpack.c.l.b16 %v73
    %v122 = vunpack.c.l.b16 %v74
    %v123 = vunpack.c.l.b16 %v75
    %v124 = vunpack.c.l.b16 %v76
    %v125 = vunpack.c.l.b16 %v77
    %v126 = vunpack.c.l.b16 %v78
    %v127 = vunpack.c.l.b16 %v79
    %v128 = vunpack.c.l.b16 %v80
    %v129 = vpack.c.b16 %v114, %v113
    %v130 = vpack.c.b16 %v116, %v115
    %v131 = vpack.c.b16 %v118, %v117
    %v132 = vpack.c.b16 %v120, %v119
    %v133 = vpack.c.b16 %v122, %v121
    %v134 = vpack.c.b16 %v124, %v123
    %v135 = vpack.c.b16 %v126, %v125
    %v136 = vpack.c.b16 %v128, %v127
    %v161 = vunpack.c.l.b16 %v81
    %v162 = vunpack.c.l.b16 %v82
    %v163 = vunpack.c.l.b16 %v83
    %v164 = vunpack.c.l.b16 %v84
    %v165 = vunpack.c.l.b16 %v85
    %v166 = vunpack.c.l.b16 %v86
    %v167 = vunpack.c.l.b16 %v87
    %v168 = vunpack.c.l.b16 %v88
    %v169 = vunpack.c.l.b16 %v89
    %v170 = vunpack.c.l.b16 %v90
    %v171 = vunpack.c.l.b16 %v91
    %v172 = vunpack.c.l.b16 %v92
    %v173 = vunpack.c.l.b16 %v93
    %v174 = vunpack.c.l.b16 %v94
    %v175 = vunpack.c.l.b16 %v95
    %v176 = vunpack.c.l.b16 %v96
    %v177 = vpack.c.b16 %v162, %v161
    %v178 = vpack.c.b16 %v164, %v163
    %v179 = vpack.c.b16 %v166, %v165
    %v180 = vpack.c.b16 %v168, %v167
    %v181 = vpack.c.b16 %v170, %v169
    %v182 = vpack.c.b16 %v172, %v171
    %v183 = vpack.c.b16 %v174, %v173
    %v184 = vpack.c.b16 %v176, %v175
    %193 = vmatpush.bf16.msra.mxu0 %v184
    %194 = vmatpush.bf16.msra.mxu0 %v183
    %195 = vmatpush.bf16.msra.mxu0 %v182
    %196 = vmatpush.bf16.msra.mxu0 %v181
    %197 = vmatpush.bf16.msra.mxu0 %v180
    %198 = vmatpush.bf16.msra.mxu0 %v179
    %199 = vmatpush.bf16.msra.mxu0 %v178
    %200 = vmatpush.bf16.msra.mxu0 %v177
    %201 = vmatmul.bf16.gmra.mxu0 %v129
    %v202 = vpop.f32.mrf.mxu0
    %v203 = vadd.f32 0.0, %v202
    %v204 = vpop.f32.mrf.mxu0
    %v205 = vadd.f32 0.0, %v204
    %206 = vmatmul.bf16.gmra.mxu0 %v130
    %v207 = vpop.f32.mrf.mxu0
    %v208 = vadd.f32 0.0, %v207
    %v209 = vpop.f32.mrf.mxu0
    %v210 = vadd.f32 0.0, %v209
    %211 = vmatmul.bf16.gmra.mxu0 %v131
    %v212 = vpop.f32.mrf.mxu0
    %v213 = vadd.f32 0.0, %v212
    %v214 = vpop.f32.mrf.mxu0
    %v215 = vadd.f32 0.0, %v214
    %216 = vmatmul.bf16.gmra.mxu0 %v132
    %v217 = vpop.f32.mrf.mxu0
    %v218 = vadd.f32 0.0, %v217
    %v219 = vpop.f32.mrf.mxu0
    %v220 = vadd.f32 0.0, %v219
    %221 = vmatmul.bf16.gmra.mxu0 %v133
    %v222 = vpop.f32.mrf.mxu0
    %v223 = vadd.f32 0.0, %v222
    %v224 = vpop.f32.mrf.mxu0
    %v225 = vadd.f32 0.0, %v224
    %226 = vmatmul.bf16.gmra.mxu0 %v134
    %v227 = vpop.f32.mrf.mxu0
    %v228 = vadd.f32 0.0, %v227
    %v229 = vpop.f32.mrf.mxu0
    %v230 = vadd.f32 0.0, %v229
    %231 = vmatmul.bf16.gmra.mxu0 %v135
    %v232 = vpop.f32.mrf.mxu0
    %v233 = vadd.f32 0.0, %v232
    %v234 = vpop.f32.mrf.mxu0
    %v235 = vadd.f32 0.0, %v234
    %236 = vmatmul.bf16.gmra.mxu0 %v136
    %v237 = vpop.f32.mrf.mxu0
    %v238 = vadd.f32 0.0, %v237
    %v239 = vpop.f32.mrf.mxu0
    %v240 = vadd.f32 0.0, %v239
    %241 = vdwg.mxu0
    %v242 = vpack.c.bf16 %v205, %v203
    %v243 = vpack.c.bf16 %v210, %v208
    %v244 = vpack.c.bf16 %v215, %v213
    %v245 = vpack.c.bf16 %v220, %v218
    %v246 = vpack.c.bf16 %v225, %v223
    %v247 = vpack.c.bf16 %v230, %v228
    %v248 = vpack.c.bf16 %v235, %v233
    %v249 = vpack.c.bf16 %v240, %v238
    %v250 = vld [vmem:[#allocation7] sm:$0xf]
    %v251 = vld [vmem:[#allocation7 + $0x4] sm:$0xf]
    %v252 = vld [vmem:[#allocation7 + $0x8] sm:$0xf]
    %v253 = vld [vmem:[#allocation7 + $0xc] sm:$0xf]
    %v254 = vld [vmem:[#allocation7 + $0x10] sm:$0xf]
    %v255 = vld [vmem:[#allocation7 + $0x14] sm:$0xf]
    %v256 = vld [vmem:[#allocation7 + $0x18] sm:$0xf]
    %v257 = vld [vmem:[#allocation7 + $0x1c] sm:$0xf]
    %v258 = vld [vmem:[#allocation7 + $0x20] sm:$0xf]
    %v259 = vld [vmem:[#allocation7 + $0x24] sm:$0xf]
    %v260 = vld [vmem:[#allocation7 + $0x28] sm:$0xf]
    %v261 = vld [vmem:[#allocation7 + $0x2c] sm:$0xf]
    %v262 = vld [vmem:[#allocation7 + $0x30] sm:$0xf]
    %v263 = vld [vmem:[#allocation7 + $0x34] sm:$0xf]
    %v264 = vld [vmem:[#allocation7 + $0x38] sm:$0xf]
    %v265 = vld [vmem:[#allocation7 + $0x3c] sm:$0xf]
    %v266 = vld [vmem:[%s3] sm:$0x1]
    %v268 = vperm.slane %v266, 0
    %v286 = vunpack.c.l.b16 %v250
    %v287 = vunpack.c.l.b16 %v251
    %v288 = vunpack.c.l.b16 %v252
    %v289 = vunpack.c.l.b16 %v253
    %v290 = vunpack.c.l.b16 %v254
    %v291 = vunpack.c.l.b16 %v255
    %v292 = vunpack.c.l.b16 %v256
    %v293 = vunpack.c.l.b16 %v257
    %v294 = vunpack.c.l.b16 %v258
    %v295 = vunpack.c.l.b16 %v259
    %v296 = vunpack.c.l.b16 %v260
    %v297 = vunpack.c.l.b16 %v261
    %v298 = vunpack.c.l.b16 %v262
    %v299 = vunpack.c.l.b16 %v263
    %v300 = vunpack.c.l.b16 %v264
    %v301 = vunpack.c.l.b16 %v265
    %v302 = vpack.c.b16 %v287, %v286
    %v303 = vpack.c.b16 %v289, %v288
    %v304 = vpack.c.b16 %v291, %v290
    %v305 = vpack.c.b16 %v293, %v292
    %v306 = vpack.c.b16 %v295, %v294
    %v307 = vpack.c.b16 %v297, %v296
    %v308 = vpack.c.b16 %v299, %v298
    %v309 = vpack.c.b16 %v301, %v300
    %318 = vmatpush.bf16.msra.mxu0 %v249
    %319 = vmatpush.bf16.msra.mxu0 %v248
    %320 = vmatpush.bf16.msra.mxu0 %v247
    %321 = vmatpush.bf16.msra.mxu0 %v246
    %322 = vmatpush.bf16.msra.mxu0 %v245
    %323 = vmatpush.bf16.msra.mxu0 %v244
    %324 = vmatpush.bf16.msra.mxu0 %v243
    %325 = vmatpush.bf16.msra.mxu0 %v242
    %326 = vmatmul.bf16.gmra.mxu0 %v302
    %v327 = vpop.f32.mrf.mxu0
    %v328 = vadd.f32 %v268, %v327
    %v329 = vpop.f32.mrf.mxu0
    %v330 = vadd.f32 %v268, %v329
    %331 = vmatmul.bf16.gmra.mxu0 %v303
    %v332 = vpop.f32.mrf.mxu0
    %v333 = vadd.f32 %v268, %v332
    %v334 = vpop.f32.mrf.mxu0
    %v335 = vadd.f32 %v268, %v334
    %336 = vmatmul.bf16.gmra.mxu0 %v304
    %v337 = vpop.f32.mrf.mxu0
    %v338 = vadd.f32 %v268, %v337
    %v339 = vpop.f32.mrf.mxu0
    %v340 = vadd.f32 %v268, %v339
    %341 = vmatmul.bf16.gmra.mxu0 %v305
    %v342 = vpop.f32.mrf.mxu0
    %v343 = vadd.f32 %v268, %v342
    %v344 = vpop.f32.mrf.mxu0
    %v345 = vadd.f32 %v268, %v344
    %346 = vmatmul.bf16.gmra.mxu0 %v306
    %v347 = vpop.f32.mrf.mxu0
    %v348 = vadd.f32 %v268, %v347
    %v349 = vpop.f32.mrf.mxu0
    %v350 = vadd.f32 %v268, %v349
    %351 = vmatmul.bf16.gmra.mxu0 %v307
    %v352 = vpop.f32.mrf.mxu0
    %v353 = vadd.f32 %v268, %v352
    %v354 = vpop.f32.mrf.mxu0
    %v355 = vadd.f32 %v268, %v354
    %356 = vmatmul.bf16.gmra.mxu0 %v308
    %v357 = vpop.f32.mrf.mxu0
    %v358 = vadd.f32 %v268, %v357
    %v359 = vpop.f32.mrf.mxu0
    %v360 = vadd.f32 %v268, %v359
    %361 = vmatmul.bf16.gmra.mxu0 %v309
    %v362 = vpop.f32.mrf.mxu0
    %v363 = vadd.f32 %v268, %v362
    %v364 = vpop.f32.mrf.mxu0
    %v365 = vadd.f32 %v268, %v364
    %366 = vdwg.mxu0
    %v367 = vmax.f32 %v328, 0.0
    %v368 = vmax.f32 %v330, 0.0
    %v369 = vmax.f32 %v333, 0.0
    %v370 = vmax.f32 %v335, 0.0
    %v371 = vmax.f32 %v338, 0.0
    %v372 = vmax.f32 %v340, 0.0
    %v373 = vmax.f32 %v343, 0.0
    %v374 = vmax.f32 %v345, 0.0
    %v375 = vmax.f32 %v348, 0.0
    %v376 = vmax.f32 %v350, 0.0
    %v377 = vmax.f32 %v353, 0.0
    %v378 = vmax.f32 %v355, 0.0
    %v379 = vmax.f32 %v358, 0.0
    %v380 = vmax.f32 %v360, 0.0
    %v381 = vmax.f32 %v363, 0.0
    %v382 = vmax.f32 %v365, 0.0
    %383 = vst [vmem:[#allocation8] sm:$0xff] %v367
    %384 = vst [vmem:[#allocation8 + $0x8] sm:$0xff] %v368
    %385 = vst [vmem:[#allocation8 + $0x10] sm:$0xff] %v369
    %386 = vst [vmem:[#allocation8 + $0x18] sm:$0xff] %v370
    %387 = vst [vmem:[#allocation8 + $0x20] sm:$0xff] %v371
    %388 = vst [vmem:[#allocation8 + $0x28] sm:$0xff] %v372
    %389 = vst [vmem:[#allocation8 + $0x30] sm:$0xff] %v373
    %390 = vst [vmem:[#allocation8 + $0x38] sm:$0xff] %v374
    %391 = vst [vmem:[#allocation8 + $0x40] sm:$0xff] %v375
    %392 = vst [vmem:[#allocation8 + $0x48] sm:$0xff] %v376
    %393 = vst [vmem:[#allocation8 + $0x50] sm:$0xff] %v377
    %394 = vst [vmem:[#allocation8 + $0x58] sm:$0xff] %v378
    %395 = vst [vmem:[#allocation8 + $0x60] sm:$0xff] %v379
    %396 = vst [vmem:[#allocation8 + $0x68] sm:$0xff] %v380
    %397 = vst [vmem:[#allocation8 + $0x70] sm:$0xff] %v381
    %398 = vst [vmem:[#allocation8 + $0x78] sm:$0xff] %v382
    // Predicated region
    $region30: #{tpu_custom_call.1} parent=1 // pred_check
      _
    $region31: #{tpu_custom_call.1} parent=1 // pred_check_branch
      %400 = sbr.rel (0) target = $region33
    $region32: #{tpu_custom_call.1} parent=1 // pred_region
      %402 = vsyncadd [#allocation4], 0
      %s403 = sshll.u32 [#allocation8], 4
      %s404 = int_to_ptr.vmem [resolvable:$true] %s403
      %s405 = sshll.u32 %s4, 4
      %s406 = int_to_ptr.hbm [resolvable:$true] %s405
      %411 = dma.vmem_to_hbm [thread:$0]  %s404, 2048, %s406, [#allocation4], 128, 128, 8
    $region33: #{tpu_custom_call.1} parent=1 // pred_fallthru
      _
    // Predicated region
    $region34: #{tpu_custom_call.1} parent=1 // pred_check
      _
    $region35: #{tpu_custom_call.1} parent=1 // pred_check_branch
      %413 = sbr.rel (0) target = $region37
    $region36: #{tpu_custom_call.1} parent=1 // pred_region
      %415 = dma.done [#allocation4], 2048
    $region37: #{tpu_custom_call.1} parent=1 // pred_fallthru
      _
    %416 = vsyncpa [#allocation3], 1
    %417 = vsyncpa [#allocation6], 1
    %418 = vsyncpa [#allocation4], 1

</llo_original>
